<compile_context>
chip_gen: v5e
topology: v5e:2x2
jax: 0.10.0
libtpu: 0.0.40
codegen_flags: <defaults>
</compile_context>

<pallas_src>
import functools

import jax
import jax.numpy as jnp
from jax import lax
from jax.experimental import pallas as pl
from jax.experimental.pallas import tpu as pltpu

BN_EPS = 1e-5
_TILE_M = 512   # lane-tile (im2col columns) per grid step; safe for v7x's 64 MiB VMEM


def _round_up(x, m):
    return (x + m - 1) // m * m


# ----------------------------------------------------------------------------- kernel
def _model_kernel(xcol_ref, wconv_ref, gamma_ref, beta_ref, fcw_ref, fcb_ref,
                  out_ref, pooled_acc, sq_acc, *, hw, n_elems):
    """Fused conv(as matmul) + BN(train stats) + global-avg-pool + Linear,
    row-tiled over the M = N*H*W axis with VMEM accumulators."""
    step = pl.program_id(0)
    tile_m = xcol_ref.shape[1]
    n_pad = pooled_acc.shape[1]

    @pl.when(step == 0)
    def _init():
        pooled_acc[...] = jnp.zeros_like(pooled_acc)
        sq_acc[...] = jnp.zeros_like(sq_acc)

    # ---- Conv2d(1, 8, 3, pad=1) as an im2col matmul (channels in sublanes) ----
    conv = jnp.dot(wconv_ref[...], xcol_ref[...],
                   preferred_element_type=jnp.float32)            # (8, tile_m)

    # ---- per-sample selection matrix for this tile (generated in-kernel) ----
    # sel[m, s] = 1 iff global column (step*tile_m + m) belongs to sample s.
    m0 = step * tile_m
    gm = lax.broadcasted_iota(jnp.int32, (tile_m, n_pad), 0) + m0
    col = lax.broadcasted_iota(jnp.int32, (tile_m, n_pad), 1)
    lo = col * hw
    sel = jnp.where((gm >= lo) & (gm < lo + hw), 1.0, 0.0)        # (tile_m, n_pad)

    # ---- MXU reductions: per-sample channel sums & sums-of-squares ----
    pooled_acc[...] += jnp.dot(conv, sel, preferred_element_type=jnp.float32)
    sq_acc[...] += jnp.dot(conv * conv, sel, preferred_element_type=jnp.float32)

    @pl.when(step == pl.num_programs(0) - 1)
    def _finalize():
        # BatchNorm2d training-mode statistics over (N, H, W), per channel.
        ch_sum = jnp.sum(pooled_acc[...], axis=1, keepdims=True)   # (8, 1)
        sq_sum = jnp.sum(sq_acc[...], axis=1, keepdims=True)       # (8, 1)
        mean = ch_sum * (1.0 / n_elems)
        var = sq_sum * (1.0 / n_elems) - mean * mean               # biased variance
        scale = lax.rsqrt(var + BN_EPS) * gamma_ref[...]           # (8, 1)
        # BN is a per-channel affine map => commutes with the average pool:
        pooled = pooled_acc[...] * (1.0 / hw)                      # (8, n_pad)
        bn = (pooled - mean) * scale + beta_ref[...]               # (8, n_pad)
        # Linear(8, 2); weights zero-padded to (8, 8) so the store is aligned.
        out_ref[...] = jnp.dot(fcw_ref[...], bn,
                               preferred_element_type=jnp.float32) + fcb_ref[...]


# ----------------------------------------------------------------------------- wrapper
def _im2col_3x3_pad1_T(x_nchw):
    """(N, 1, H, W) -> (9, N*H*W) patches, tap order kh*3 + kw (lane-dense)."""
    n, c, h, w = x_nchw.shape
    assert c == 1
    xp = jnp.pad(x_nchw[:, 0], ((0, 0), (1, 1), (1, 1)))           # (N, H+2, W+2)
    cols = [xp[:, kh:kh + h, kw:kw + w].reshape(n * h * w)
            for kh in range(3) for kw in range(3)]
    return jnp.stack(cols, axis=0)                                  # (9, N*H*W)


@jax.jit
def model_forward(x, conv_w, conv_b, bn_gamma, bn_beta, fc_w, fc_b):
    """x: (N, 1, H, W) float32, PyTorch-style NCHW.  Returns (N, 2) float32.

    conv_b is accepted for parity with the PyTorch module but is unused:
    training-mode BatchNorm exactly cancels a per-channel conv bias."""
    del conv_b
    n, _, h, w = x.shape
    hw = h * w
    m_total = n * hw

    x_col = _im2col_3x3_pad1_T(x.astype(jnp.float32))               # (9, M)

    tile_m = min(_TILE_M, _round_up(m_total, 128))
    m_pad = _round_up(m_total, tile_m)
    if m_pad > m_total:
        # Zero columns are harmless: with no conv bias they contribute exactly
        # zero to every accumulator.
        x_col = jnp.pad(x_col, ((0, 0), (0, m_pad - m_total)))
    num_tiles = m_pad // tile_m

    n_pad = _round_up(max(n, 1), 8)                                 # pooled-sample lanes

    w_conv = conv_w.reshape(8, 9).astype(jnp.float32)               # (8, 9)
    gamma = bn_gamma.reshape(8, 1).astype(jnp.float32)
    beta = bn_beta.reshape(8, 1).astype(jnp.float32)
    fc_w_pad = jnp.zeros((8, 8), jnp.float32).at[:2, :].set(fc_w.astype(jnp.float32))
    fc_b_pad = jnp.zeros((8, 1), jnp.float32).at[:2, 0].set(fc_b.astype(jnp.float32))

    kernel = functools.partial(_model_kernel, hw=hw, n_elems=m_total)

    out_pad = pl.pallas_call(
        kernel,
        out_shape=jax.ShapeDtypeStruct((8, n_pad), jnp.float32),
        grid_spec=pltpu.PrefetchScalarGridSpec(
            num_scalar_prefetch=0,
            grid=(num_tiles,),
            in_specs=[
                pl.BlockSpec((9, tile_m), lambda i: (0, i)),        # im2col tile
                pl.BlockSpec((8, 9), lambda i: (0, 0)),             # conv weights
                pl.BlockSpec((8, 1), lambda i: (0, 0)),             # gamma
                pl.BlockSpec((8, 1), lambda i: (0, 0)),             # beta
                pl.BlockSpec((8, 8), lambda i: (0, 0)),             # fc weights (padded)
                pl.BlockSpec((8, 1), lambda i: (0, 0)),             # fc bias (padded)
            ],
            out_specs=pl.BlockSpec((8, n_pad), lambda i: (0, 0)),
            scratch_shapes=[pltpu.VMEM((8, n_pad), jnp.float32),    # per-sample sums
                            pltpu.VMEM((8, n_pad), jnp.float32)],   # per-sample sumsq
        ),
        compiler_params=pltpu.CompilerParams(
            dimension_semantics=("arbitrary",)),                    # reduction axis
    )(x_col, w_conv, gamma, beta, fc_w_pad, fc_b_pad)

    return out_pad[:2, :n].T                                        # (N, 2)


# ----------------------------------------------------------------------------- reference
def _reference(x, conv_w, conv_b, bn_gamma, bn_beta, fc_w, fc_b):
    conv = lax.conv_general_dilated(
        x, conv_w.reshape(8, 1, 3, 3), window_strides=(1, 1), padding="SAME",
        dimension_numbers=("NCHW", "OIHW", "NCHW"))
    conv = conv + conv_b.reshape(1, 8, 1, 1)
    mean = jnp.mean(conv, axis=(0, 2, 3), keepdims=True)
    var = jnp.mean((conv - mean) ** 2, axis=(0, 2, 3), keepdims=True)
    bn = (conv - mean) * lax.rsqrt(var + BN_EPS)
    bn = bn * bn_gamma.reshape(1, 8, 1, 1) + bn_beta.reshape(1, 8, 1, 1)
    pooled = jnp.mean(bn, axis=(2, 3))                              # (N, 8)
    return pooled @ fc_w.T + fc_b


# ----------------------------------------------------------------------------- main
if __name__ == "__main__":
    key = jax.random.PRNGKey(0)
    k_x1, k_x2, k_cw, k_cb, k_g, k_be, k_fw, k_fb = jax.random.split(key, 8)

    # Synthetic parameters with the right shapes (nn.Conv2d(1,8,3), nn.BatchNorm2d(8),
    # nn.Linear(8,2)).  gamma/beta perturbed from PyTorch defaults (1, 0) to
    # exercise the full BN affine path.
    conv_w = jax.random.normal(k_cw, (8, 1, 3, 3), jnp.float32) * 0.3
    conv_b = jax.random.normal(k_cb, (8,), jnp.float32) * 0.1
    bn_gamma = 1.0 + 0.1 * jax.random.normal(k_g, (8,), jnp.float32)
    bn_beta = 0.1 * jax.random.normal(k_be, (8,), jnp.float32)
    fc_w = jax.random.normal(k_fw, (2, 8), jnp.float32) * 0.3
    fc_b = jax.random.normal(k_fb, (2,), jnp.float32) * 0.1

    test_cases = (
        (k_x1, (2, 1, 16, 16)),   # single-tile path
        (k_x2, (3, 1, 20, 24)),   # multi-tile path, cross-sample tiles, lane padding
    )
    for k_x, shape in test_cases:
        x = jax.random.normal(k_x, shape, jnp.float32)              # NCHW, C=1
        out = model_forward(x, conv_w, conv_b, bn_gamma, bn_beta, fc_w, fc_b)
        out = jax.block_until_ready(out)
        ref = _reference(x, conv_w, conv_b, bn_gamma, bn_beta, fc_w, fc_b)
        assert out.shape == (shape[0], 2), (out.shape, shape)
        assert jnp.allclose(out, ref, atol=2e-4, rtol=2e-4), (shape, out, ref)

    print("KERNEL_OK")
</pallas_src>

<mosaic_0001>
module attributes {stable_mosaic.version = 11 : i64} {
  func.func @_model_kernel(%arg0: i32, %arg1: memref<9x512xf32, #tpu.memory_space<vmem>>, %arg2: memref<8x9xf32, #tpu.memory_space<vmem>>, %arg3: memref<8x1xf32, #tpu.memory_space<vmem>>, %arg4: memref<8x1xf32, #tpu.memory_space<vmem>>, %arg5: memref<8x8xf32, #tpu.memory_space<vmem>>, %arg6: memref<8x1xf32, #tpu.memory_space<vmem>>, %arg7: memref<8x8xf32, #tpu.memory_space<vmem>>, %arg8: memref<8x8xf32, #tpu.memory_space<vmem>>, %arg9: memref<8x8xf32, #tpu.memory_space<vmem>>) attributes {dimension_semantics = [#tpu.dimension_semantics<arbitrary>], iteration_bounds = array<i64: 1>, scalar_prefetch = 0 : i64, scratch_operands = 2 : i64, tpu.core_type = #tpu.core_type<tc>, window_params = [{transform_indices = @transform_0, window_bounds = array<i64: 9, 512>}, {pipeline_mode = #tpu.pipeline_mode<synchronous>, transform_indices = @transform_1, window_bounds = array<i64: 8, 9>}, {pipeline_mode = #tpu.pipeline_mode<synchronous>, transform_indices = @transform_2, window_bounds = array<i64: 8, 1>}, {pipeline_mode = #tpu.pipeline_mode<synchronous>, transform_indices = @transform_3, window_bounds = array<i64: 8, 1>}, {pipeline_mode = #tpu.pipeline_mode<synchronous>, transform_indices = @transform_4, window_bounds = array<i64: 8, 8>}, {pipeline_mode = #tpu.pipeline_mode<synchronous>, transform_indices = @transform_5, window_bounds = array<i64: 8, 1>}, {pipeline_mode = #tpu.pipeline_mode<synchronous>, transform_indices = @transform_6, window_bounds = array<i64: 8, 8>}]} {
    %c0_i32 = arith.constant 0 : i32
    %0 = arith.cmpi eq, %arg0, %c0_i32 : i32
    %1 = arith.extui %0 : i1 to i32
    %c0_i32_0 = arith.constant 0 : i32
    %2 = arith.cmpi ne, %1, %c0_i32_0 : i32
    scf.if %2 {
      %cst_19 = arith.constant 0.000000e+00 : f32
      %33 = vector.broadcast %cst_19 : f32 to vector<8x8xf32>
      %c0_20 = arith.constant 0 : index
      %c0_21 = arith.constant 0 : index
      %34 = vector.load %arg8[%c0_20, %c0_21] : memref<8x8xf32, #tpu.memory_space<vmem>>, vector<8x8xf32>
      tpu.vector_store %arg8[%c0_20, %c0_21], %33 {strides = array<i32>} : memref<8x8xf32, #tpu.memory_space<vmem>>, vector<8x8xf32>,
      %cst_22 = arith.constant 0.000000e+00 : f32
      %35 = vector.broadcast %cst_22 : f32 to vector<8x8xf32>
      %c0_23 = arith.constant 0 : index
      %c0_24 = arith.constant 0 : index
      %36 = vector.load %arg9[%c0_23, %c0_24] : memref<8x8xf32, #tpu.memory_space<vmem>>, vector<8x8xf32>
      tpu.vector_store %arg9[%c0_23, %c0_24], %35 {strides = array<i32>} : memref<8x8xf32, #tpu.memory_space<vmem>>, vector<8x8xf32>,
    } else {
    }
    %c0 = arith.constant 0 : index
    %c0_1 = arith.constant 0 : index
    %3 = vector.load %arg2[%c0, %c0_1] : memref<8x9xf32, #tpu.memory_space<vmem>>, vector<8x9xf32>
    %c0_2 = arith.constant 0 : index
    %c0_3 = arith.constant 0 : index
    %4 = vector.load %arg1[%c0_2, %c0_3] : memref<9x512xf32, #tpu.memory_space<vmem>>, vector<9x512xf32>
    %cst = arith.constant dense<0.000000e+00> : vector<8x512xf32>
    %5 = tpu.matmul %3, %4, %cst {dimension_numbers = #tpu.dot_dimension_numbers<[1], [0], [0], [1], [0, 0, 1, 1], [], []>} : vector<8x9xf32>, vector<9x512xf32>, vector<8x512xf32> -> vector<8x512xf32>
    %c512_i32 = arith.constant 512 : i32
    %6 = arith.muli %arg0, %c512_i32 : i32
    %7 = tpu.iota {dimensions = array<i32: 0>} : vector<512x8xi32>
    %8 = vector.broadcast %6 : i32 to vector<512x8xi32>
    %9 = arith.addi %7, %8 : vector<512x8xi32>
    %10 = tpu.iota {dimensions = array<i32: 1>} : vector<512x8xi32>
    %c256_i32 = arith.constant 256 : i32
    %11 = vector.broadcast %c256_i32 : i32 to vector<512x8xi32>
    %12 = arith.muli %10, %11 : vector<512x8xi32>
    %13 = arith.cmpi sge, %9, %12 : vector<512x8xi32>
    %c256_i32_4 = arith.constant 256 : i32
    %14 = vector.broadcast %c256_i32_4 : i32 to vector<512x8xi32>
    %15 = arith.addi %12, %14 : vector<512x8xi32>
    %16 = arith.cmpi slt, %9, %15 : vector<512x8xi32>
    %17 = arith.andi %13, %16 : vector<512x8xi1>
    %cst_5 = arith.constant 1.000000e+00 : f32
    %cst_6 = arith.constant 0.000000e+00 : f32
    %18 = vector.broadcast %cst_5 : f32 to vector<512x8xf32>
    %19 = vector.broadcast %cst_6 : f32 to vector<512x8xf32>
    %20 = arith.select %17, %18, %19 : vector<512x8xi1>, vector<512x8xf32>
    %c0_7 = arith.constant 0 : index
    %c0_8 = arith.constant 0 : index
    %21 = vector.load %arg8[%c0_7, %c0_8] : memref<8x8xf32, #tpu.memory_space<vmem>>, vector<8x8xf32>
    %cst_9 = arith.constant dense<0.000000e+00> : vector<8x8xf32>
    %22 = tpu.matmul %5, %20, %cst_9 {dimension_numbers = #tpu.dot_dimension_numbers<[1], [0], [0], [1], [0, 0, 1, 1], [], []>} : vector<8x512xf32>, vector<512x8xf32>, vector<8x8xf32> -> vector<8x8xf32>
    %23 = arith.addf %21, %22 : vector<8x8xf32>
    %c0_10 = arith.constant 0 : index
    %c0_11 = arith.constant 0 : index
    %24 = vector.load %arg8[%c0_10, %c0_11] : memref<8x8xf32, #tpu.memory_space<vmem>>, vector<8x8xf32>
    tpu.vector_store %arg8[%c0_10, %c0_11], %23 {strides = array<i32>} : memref<8x8xf32, #tpu.memory_space<vmem>>, vector<8x8xf32>,
    %c0_12 = arith.constant 0 : index
    %c0_13 = arith.constant 0 : index
    %25 = vector.load %arg9[%c0_12, %c0_13] : memref<8x8xf32, #tpu.memory_space<vmem>>, vector<8x8xf32>
    %26 = arith.mulf %5, %5 : vector<8x512xf32>
    %cst_14 = arith.constant dense<0.000000e+00> : vector<8x8xf32>
    %27 = tpu.matmul %26, %20, %cst_14 {dimension_numbers = #tpu.dot_dimension_numbers<[1], [0], [0], [1], [0, 0, 1, 1], [], []>} : vector<8x512xf32>, vector<512x8xf32>, vector<8x8xf32> -> vector<8x8xf32>
    %28 = arith.addf %25, %27 : vector<8x8xf32>
    %c0_15 = arith.constant 0 : index
    %c0_16 = arith.constant 0 : index
    %29 = vector.load %arg9[%c0_15, %c0_16] : memref<8x8xf32, #tpu.memory_space<vmem>>, vector<8x8xf32>
    tpu.vector_store %arg9[%c0_15, %c0_16], %28 {strides = array<i32>} : memref<8x8xf32, #tpu.memory_space<vmem>>, vector<8x8xf32>,
    %c0_i32_17 = arith.constant 0 : i32
    %30 = arith.cmpi eq, %arg0, %c0_i32_17 : i32
    %31 = arith.extui %30 : i1 to i32
    %c0_i32_18 = arith.constant 0 : i32
    %32 = arith.cmpi ne, %31, %c0_i32_18 : i32
    scf.if %32 {
      %c0_19 = arith.constant 0 : index
      %c0_20 = arith.constant 0 : index
      %33 = vector.load %arg8[%c0_19, %c0_20] : memref<8x8xf32, #tpu.memory_space<vmem>>, vector<8x8xf32>
      %cst_21 = arith.constant dense<0.000000e+00> : vector<8xf32>
      %34 = vector.multi_reduction <add>, %33, %cst_21 [1] : vector<8x8xf32> to vector<8xf32>
      %35 = vector.shape_cast %34 : vector<8xf32> to vector<8x1xf32>
      %c0_22 = arith.constant 0 : index
      %c0_23 = arith.constant 0 : index
      %36 = vector.load %arg9[%c0_22, %c0_23] : memref<8x8xf32, #tpu.memory_space<vmem>>, vector<8x8xf32>
      %cst_24 = arith.constant dense<0.000000e+00> : vector<8xf32>
      %37 = vector.multi_reduction <add>, %36, %cst_24 [1] : vector<8x8xf32> to vector<8xf32>
      %38 = vector.shape_cast %37 : vector<8xf32> to vector<8x1xf32>
      %cst_25 = arith.constant 0.001953125 : f32
      %39 = vector.broadcast %cst_25 : f32 to vector<8x1xf32>
      %40 = arith.mulf %35, %39 : vector<8x1xf32>
      %cst_26 = arith.constant 0.001953125 : f32
      %41 = vector.broadcast %cst_26 : f32 to vector<8x1xf32>
      %42 = arith.mulf %38, %41 : vector<8x1xf32>
      %43 = arith.mulf %40, %40 : vector<8x1xf32>
      %44 = arith.subf %42, %43 : vector<8x1xf32>
      %cst_27 = arith.constant 9.99999974E-6 : f32
      %45 = vector.broadcast %cst_27 : f32 to vector<8x1xf32>
      %46 = arith.addf %44, %45 : vector<8x1xf32>
      %47 = math.rsqrt %46 : vector<8x1xf32>
      %c0_28 = arith.constant 0 : index
      %c0_29 = arith.constant 0 : index
      %48 = vector.load %arg3[%c0_28, %c0_29] : memref<8x1xf32, #tpu.memory_space<vmem>>, vector<8x1xf32>
      %49 = arith.mulf %47, %48 : vector<8x1xf32>
      %c0_30 = arith.constant 0 : index
      %c0_31 = arith.constant 0 : index
      %50 = vector.load %arg8[%c0_30, %c0_31] : memref<8x8xf32, #tpu.memory_space<vmem>>, vector<8x8xf32>
      %cst_32 = arith.constant 3.906250e-03 : f32
      %51 = vector.broadcast %cst_32 : f32 to vector<8x8xf32>
      %52 = arith.mulf %50, %51 : vector<8x8xf32>
      %53 = vector.broadcast %40 : vector<8x1xf32> to vector<8x8xf32>
      %54 = arith.subf %52, %53 : vector<8x8xf32>
      %55 = vector.broadcast %49 : vector<8x1xf32> to vector<8x8xf32>
      %56 = arith.mulf %54, %55 : vector<8x8xf32>
      %c0_33 = arith.constant 0 : index
      %c0_34 = arith.constant 0 : index
      %57 = vector.load %arg4[%c0_33, %c0_34] : memref<8x1xf32, #tpu.memory_space<vmem>>, vector<8x1xf32>
      %58 = vector.broadcast %57 : vector<8x1xf32> to vector<8x8xf32>
      %59 = arith.addf %56, %58 : vector<8x8xf32>
      %c0_35 = arith.constant 0 : index
      %c0_36 = arith.constant 0 : index
      %60 = vector.load %arg5[%c0_35, %c0_36] : memref<8x8xf32, #tpu.memory_space<vmem>>, vector<8x8xf32>
      %cst_37 = arith.constant dense<0.000000e+00> : vector<8x8xf32>
      %61 = tpu.matmul %60, %59, %cst_37 {dimension_numbers = #tpu.dot_dimension_numbers<[1], [0], [0], [1], [0, 0, 1, 1], [], []>} : vector<8x8xf32>, vector<8x8xf32>, vector<8x8xf32> -> vector<8x8xf32>
      %c0_38 = arith.constant 0 : index
      %c0_39 = arith.constant 0 : index
      %62 = vector.load %arg6[%c0_38, %c0_39] : memref<8x1xf32, #tpu.memory_space<vmem>>, vector<8x1xf32>
      %63 = vector.broadcast %62 : vector<8x1xf32> to vector<8x8xf32>
      %64 = arith.addf %61, %63 : vector<8x8xf32>
      %c0_40 = arith.constant 0 : index
      %c0_41 = arith.constant 0 : index
      %65 = vector.load %arg7[%c0_40, %c0_41] : memref<8x8xf32, #tpu.memory_space<vmem>>, vector<8x8xf32>
      tpu.vector_store %arg7[%c0_40, %c0_41], %64 {strides = array<i32>} : memref<8x8xf32, #tpu.memory_space<vmem>>, vector<8x8xf32>,
    } else {
    }
    return
  }
  func.func @transform_0(%arg0: i32) -> (i32, i32) {
    %c0_i32 = arith.constant 0 : i32
    %c0_i32_0 = arith.constant 0 : i32
    return %c0_i32, %arg0 : i32, i32
  }
  func.func @transform_1(%arg0: i32) -> (i32, i32) {
    %c0_i32 = arith.constant 0 : i32
    %c0_i32_0 = arith.constant 0 : i32
    %c0_i32_1 = arith.constant 0 : i32
    return %c0_i32, %c0_i32_0 : i32, i32
  }
  func.func @transform_2(%arg0: i32) -> (i32, i32) {
    %c0_i32 = arith.constant 0 : i32
    %c0_i32_0 = arith.constant 0 : i32
    %c0_i32_1 = arith.constant 0 : i32
    return %c0_i32, %c0_i32_0 : i32, i32
  }
  func.func @transform_3(%arg0: i32) -> (i32, i32) {
    %c0_i32 = arith.constant 0 : i32
    %c0_i32_0 = arith.constant 0 : i32
    %c0_i32_1 = arith.constant 0 : i32
    return %c0_i32, %c0_i32_0 : i32, i32
  }
  func.func @transform_4(%arg0: i32) -> (i32, i32) {
    %c0_i32 = arith.constant 0 : i32
    %c0_i32_0 = arith.constant 0 : i32
    %c0_i32_1 = arith.constant 0 : i32
    return %c0_i32, %c0_i32_0 : i32, i32
  }
  func.func @transform_5(%arg0: i32) -> (i32, i32) {
    %c0_i32 = arith.constant 0 : i32
    %c0_i32_0 = arith.constant 0 : i32
    %c0_i32_1 = arith.constant 0 : i32
    return %c0_i32, %c0_i32_0 : i32, i32
  }
  func.func @transform_6(%arg0: i32) -> (i32, i32) {
    %c0_i32 = arith.constant 0 : i32
    %c0_i32_0 = arith.constant 0 : i32
    %c0_i32_1 = arith.constant 0 : i32
    return %c0_i32, %c0_i32_0 : i32, i32
  }
}

</mosaic_0001>

<llo_original>
// kernel: model_forward.1
$region0: #{model_forward.1}
  #allocation0 [shape = 'u32[]', space=smem, size = 0x4, offset = 0x4, fixed_abs, tag = 'smem constant byte address 0x4 - core index']
  #allocation1 [shape = 'u32[72,128]{1,0:T(1,128)}', space=vmem, size = 0x9000, scoped, tag = 'internal scratch']
  #allocation2 [shape = 'f32[8,8]{1,0:T(8,128)}', space=vmem, size = 0x1000, scoped, tag = 'scratch operand']
  #allocation3 [shape = 'f32[8,8]{1,0:T(8,128)}', space=vmem, size = 0x1000, scoped, tag = 'scratch operand']
  %s0 = inlined_call_operand.vmem [shape: f32[9,512], index: 0, kind: input, shape index: {}]
  %s1 = inlined_call_operand.vmem [shape: f32[8,9], index: 1, kind: input, shape index: {}]
  %s2 = inlined_call_operand.vmem [shape: f32[8,1], index: 2, kind: input, shape index: {}]
  %s3 = inlined_call_operand.vmem [shape: f32[8,1], index: 3, kind: input, shape index: {}]
  %s4 = inlined_call_operand.vmem [shape: f32[8,8], index: 4, kind: input, shape index: {}]
  %s5 = inlined_call_operand.vmem [shape: f32[8,1], index: 5, kind: input, shape index: {}]
  %s6 = inlined_call_operand.vmem [shape: f32[8,8], index: 6, kind: output, shape index: {}]
  %s7 = sld [smem:[#allocation0]]
  $region42: #{model_forward.1} parent=0
    _
  %s9 = ssub.s32 1, %s7
  %s10 = scalar_select 0, %s9, %s7
  // Predicated region
  $region2: #{model_forward.1} parent=0 // pred_check
    _
  $region3: #{model_forward.1} parent=0 // pred_check_branch
    %12 = sbr.rel (0) target = $region5
  $region4: #{model_forward.1} parent=0 // pred_region
    _
  $region5: #{model_forward.1} parent=0 // pred_fallthru
    _
  // Predicated region
  $region6: #{model_forward.1} parent=0 // pred_check
    _
  $region7: #{model_forward.1} parent=0 // pred_check_branch
    %14 = sbr.rel (0) target = $region9
  $region8: #{model_forward.1} parent=0 // pred_region
    _
  $region9: #{model_forward.1} parent=0 // pred_fallthru
    _
  // Predicated region
  $region10: #{model_forward.1} parent=0 // pred_check
    _
  $region11: #{model_forward.1} parent=0 // pred_check_branch
    %16 = sbr.rel (0) target = $region13
  $region12: #{model_forward.1} parent=0 // pred_region
    _
  $region13: #{model_forward.1} parent=0 // pred_fallthru
    _
  // Predicated region
  $region14: #{model_forward.1} parent=0 // pred_check
    _
  $region15: #{model_forward.1} parent=0 // pred_check_branch
    %18 = sbr.rel (0) target = $region17
  $region16: #{model_forward.1} parent=0 // pred_region
    _
  $region17: #{model_forward.1} parent=0 // pred_fallthru
    _
  // Predicated region
  $region18: #{model_forward.1} parent=0 // pred_check
    _
  $region19: #{model_forward.1} parent=0 // pred_check_branch
    %20 = sbr.rel (0) target = $region21
  $region20: #{model_forward.1} parent=0 // pred_region
    _
  $region21: #{model_forward.1} parent=0 // pred_fallthru
    _
  // Predicated region
  $region22: #{model_forward.1} parent=0 // pred_check
    _
  $region23: #{model_forward.1} parent=0 // pred_check_branch
    %22 = sbr.rel (0) target = $region25
  $region24: #{model_forward.1} parent=0 // pred_region
    _
  $region25: #{model_forward.1} parent=0 // pred_fallthru
    _
  %p23 = scmp.eq.s32.totalorder 0, 0
  // Predicated region
  $region26: #{model_forward.1} parent=0 // pred_check
    %p24 = pneg %p23
  $region27: #{model_forward.1} parent=0 // pred_check_branch
    %26 = sbr.rel (%p24) target = $region29
  $region28: #{model_forward.1} parent=0 // pred_region
    %vm27 = vcmask 64512
    %28 = vst.msk [vmem:[#allocation2] sm:$0xff] %vm27, 0.0
    %29 = vst.msk [vmem:[#allocation3] sm:$0xff] %vm27, 0.0
  $region29: #{model_forward.1} parent=0 // pred_fallthru
    _
  %v30 = vld [vmem:[%s1] sm:$0xff]
  %v31 = vld [vmem:[%s0] sm:$0xff]
  %v32 = vld [vmem:[%s0 + $0x8] sm:$0xff]
  %v33 = vld [vmem:[%s0 + $0x10] sm:$0xff]
  %v34 = vld [vmem:[%s0 + $0x18] sm:$0xff]
  %v35 = vld [vmem:[%s0 + $0x20] sm:$0x1]
  %v36 = vld [vmem:[%s0 + $0x28] sm:$0x1]
  %v37 = vld [vmem:[%s0 + $0x30] sm:$0x1]
  %v38 = vld [vmem:[%s0 + $0x38] sm:$0x1]
  %vm39 = vcmask 72704
  %v41 = vsel %vm39, %v30, 0
  %vm43 = vcmask 1040384
  %v45 = vsel %vm43, %v35, 0
  %v48 = vsel %vm43, %v36, 0
  %v51 = vsel %vm43, %v37, 0
  %v54 = vsel %vm43, %v38, 0
  %56 = vmatpush.msra.mxu0 0.0
  %57 = vmatpush.msra.mxu0 0.0
  %58 = vmatpush.msra.mxu0 0.0
  %59 = vmatpush.msra.mxu0 0.0
  %60 = vmatpush.msra.mxu0 0.0
  %61 = vmatpush.msra.mxu0 0.0
  %62 = vmatpush.msra.mxu0 0.0
  %63 = vmatpush.msra.mxu0 0.0
  %64 = vmatpush.msra.mxu0 0.0
  %65 = vmatpush.msra.mxu0 0.0
  %66 = vmatpush.msra.mxu0 0.0
  %67 = vmatpush.msra.mxu0 0.0
  %68 = vmatpush.msra.mxu0 0.0
  %69 = vmatpush.msra.mxu0 0.0
  %70 = vmatpush.msra.mxu0 %v45
  %71 = vmatpush.msra.mxu0 %v31
  %72 = vmatmul.f32.gmra.mxu0 %v41
  %v73 = vpop.f32.mrf.mxu0
  %v74 = vadd.f32 0.0, %v73
  %75 = vdwg.mxu0
  %76 = vmatpush.msra.mxu0 0.0
  %77 = vmatpush.msra.mxu0 0.0
  %78 = vmatpush.msra.mxu0 0.0
  %79 = vmatpush.msra.mxu0 0.0
  %80 = vmatpush.msra.mxu0 0.0
  %81 = vmatpush.msra.mxu0 0.0
  %82 = vmatpush.msra.mxu0 0.0
  %83 = vmatpush.msra.mxu0 0.0
  %84 = vmatpush.msra.mxu0 0.0
  %85 = vmatpush.msra.mxu0 0.0
  %86 = vmatpush.msra.mxu0 0.0
  %87 = vmatpush.msra.mxu0 0.0
  %88 = vmatpush.msra.mxu0 0.0
  %89 = vmatpush.msra.mxu0 0.0
  %90 = vmatpush.msra.mxu0 %v48
  %91 = vmatpush.msra.mxu0 %v32
  %92 = vmatmul.f32.gmra.mxu0 %v41
  %v93 = vpop.f32.mrf.mxu0
  %v94 = vadd.f32 0.0, %v93
  %95 = vdwg.mxu0
  %96 = vmatpush.msra.mxu0 0.0
  %97 = vmatpush.msra.mxu0 0.0
  %98 = vmatpush.msra.mxu0 0.0
  %99 = vmatpush.msra.mxu0 0.0
  %100 = vmatpush.msra.mxu0 0.0
  %101 = vmatpush.msra.mxu0 0.0
  %102 = vmatpush.msra.mxu0 0.0
  %103 = vmatpush.msra.mxu0 0.0
  %104 = vmatpush.msra.mxu0 0.0
  %105 = vmatpush.msra.mxu0 0.0
  %106 = vmatpush.msra.mxu0 0.0
  %107 = vmatpush.msra.mxu0 0.0
  %108 = vmatpush.msra.mxu0 0.0
  %109 = vmatpush.msra.mxu0 0.0
  %110 = vmatpush.msra.mxu0 %v51
  %111 = vmatpush.msra.mxu0 %v33
  %112 = vmatmul.f32.gmra.mxu0 %v41
  %v113 = vpop.f32.mrf.mxu0
  %v114 = vadd.f32 0.0, %v113
  %115 = vdwg.mxu0
  %116 = vmatpush.msra.mxu0 0.0
  %117 = vmatpush.msra.mxu0 0.0
  %118 = vmatpush.msra.mxu0 0.0
  %119 = vmatpush.msra.mxu0 0.0
  %120 = vmatpush.msra.mxu0 0.0
  %121 = vmatpush.msra.mxu0 0.0
  %122 = vmatpush.msra.mxu0 0.0
  %123 = vmatpush.msra.mxu0 0.0
  %124 = vmatpush.msra.mxu0 0.0
  %125 = vmatpush.msra.mxu0 0.0
  %126 = vmatpush.msra.mxu0 0.0
  %127 = vmatpush.msra.mxu0 0.0
  %128 = vmatpush.msra.mxu0 0.0
  %129 = vmatpush.msra.mxu0 0.0
  %130 = vmatpush.msra.mxu0 %v54
  %131 = vmatpush.msra.mxu0 %v34
  %132 = vmatmul.f32.gmra.mxu0 %v41
  %v133 = vpop.f32.mrf.mxu0
  %v134 = vadd.f32 0.0, %v133
  %135 = vdwg.mxu0
  %s136 = smul.u32 0, 512
  %v137 = vlaneseq
  %v138 = vshrl.u32 %v137, 7
  %v139 = vadd.s32 %v138, 8
  %v140 = vadd.s32 %v138, 16
  %v141 = vadd.s32 %v138, 24
  %v142 = vadd.s32 %v138, 32
  %v143 = vadd.s32 %v138, 40
  %v144 = vadd.s32 %v138, 48
  %v145 = vadd.s32 %v138, 56
  %v146 = vadd.s32 %v138, 64
  %v147 = vadd.s32 %v138, 72
  %v148 = vadd.s32 %v138, 80
  %v149 = vadd.s32 %v138, 88
  %v150 = vadd.s32 %v138, 96
  %v151 = vadd.s32 %v138, 104
  %v152 = vadd.s32 %v138, 112
  %v153 = vadd.s32 %v138, 120
  %v154 = vadd.s32 %v138, 128
  %v155 = vadd.s32 %v138, 136
  %v156 = vadd.s32 %v138, 144
  %v157 = vadd.s32 %v138, 152
  %v158 = vadd.s32 %v138, 160
  %v159 = vadd.s32 %v138, 168
  %v160 = vadd.s32 %v138, 176
  %v161 = vadd.s32 %v138, 184
  %v162 = vadd.s32 %v138, 192
  %v163 = vadd.s32 %v138, 200
  %v164 = vadd.s32 %v138, 208
  %v165 = vadd.s32 %v138, 216
  %v166 = vadd.s32 %v138, 224
  %v167 = vadd.s32 %v138, 232
  %v168 = vadd.s32 %v138, 240
  %v169 = vadd.s32 %v138, 248
  %v170 = vadd.s32 %v138, 256
  %v171 = vadd.s32 %v138, 264
  %v172 = vadd.s32 %v138, 272
  %v173 = vadd.s32 %v138, 280
  %v174 = vadd.s32 %v138, 288
  %v175 = vadd.s32 %v138, 296
  %v176 = vadd.s32 %v138, 304
  %v177 = vadd.s32 %v138, 312
  %v178 = vadd.s32 %v138, 320
  %v179 = vadd.s32 %v138, 328
  %v180 = vadd.s32 %v138, 336
  %v181 = vadd.s32 %v138, 344
  %v182 = vadd.s32 %v138, 352
  %v183 = vadd.s32 %v138, 360
  %v184 = vadd.s32 %v138, 368
  %v185 = vadd.s32 %v138, 376
  %v186 = vadd.s32 %v138, 384
  %v187 = vadd.s32 %v138, 392
  %v188 = vadd.s32 %v138, 400
  %v189 = vadd.s32 %v138, 408
  %v190 = vadd.s32 %v138, 416
  %v191 = vadd.s32 %v138, 424
  %v192 = vadd.s32 %v138, 432
  %v193 = vadd.s32 %v138, 440
  %v194 = vadd.s32 %v138, 448
  %v195 = vadd.s32 %v138, 456
  %v196 = vadd.s32 %v138, 464
  %v197 = vadd.s32 %v138, 472
  %v198 = vadd.s32 %v138, 480
  %v199 = vadd.s32 %v138, 488
  %v200 = vadd.s32 %v138, 496
  %v201 = vadd.s32 %v138, 504
  %v202 = vstv %s136
  %v203 = vadd.s32 %v138, %v202
  %v204 = vadd.s32 %v139, %v202
  %v205 = vadd.s32 %v140, %v202
  %v206 = vadd.s32 %v141, %v202
  %v207 = vadd.s32 %v142, %v202
  %v208 = vadd.s32 %v143, %v202
  %v209 = vadd.s32 %v144, %v202
  %v210 = vadd.s32 %v145, %v202
  %v211 = vadd.s32 %v146, %v202
  %v212 = vadd.s32 %v147, %v202
  %v213 = vadd.s32 %v148, %v202
  %v214 = vadd.s32 %v149, %v202
  %v215 = vadd.s32 %v150, %v202
  %v216 = vadd.s32 %v151, %v202
  %v217 = vadd.s32 %v152, %v202
  %v218 = vadd.s32 %v153, %v202
  %v219 = vadd.s32 %v154, %v202
  %v220 = vadd.s32 %v155, %v202
  %v221 = vadd.s32 %v156, %v202
  %v222 = vadd.s32 %v157, %v202
  %v223 = vadd.s32 %v158, %v202
  %v224 = vadd.s32 %v159, %v202
  %v225 = vadd.s32 %v160, %v202
  %v226 = vadd.s32 %v161, %v202
  %v227 = vadd.s32 %v162, %v202
  %v228 = vadd.s32 %v163, %v202
  %v229 = vadd.s32 %v164, %v202
  %v230 = vadd.s32 %v165, %v202
  %v231 = vadd.s32 %v166, %v202
  %v232 = vadd.s32 %v167, %v202
  %v233 = vadd.s32 %v168, %v202
  %v234 = vadd.s32 %v169, %v202
  %v235 = vadd.s32 %v170, %v202
  %v236 = vadd.s32 %v171, %v202
  %v237 = vadd.s32 %v172, %v202
  %v238 = vadd.s32 %v173, %v202
  %v239 = vadd.s32 %v174, %v202
  %v240 = vadd.s32 %v175, %v202
  %v241 = vadd.s32 %v176, %v202
  %v242 = vadd.s32 %v177, %v202
  %v243 = vadd.s32 %v178, %v202
  %v244 = vadd.s32 %v179, %v202
  %v245 = vadd.s32 %v180, %v202
  %v246 = vadd.s32 %v181, %v202
  %v247 = vadd.s32 %v182, %v202
  %v248 = vadd.s32 %v183, %v202
  %v249 = vadd.s32 %v184, %v202
  %v250 = vadd.s32 %v185, %v202
  %v251 = vadd.s32 %v186, %v202
  %v252 = vadd.s32 %v187, %v202
  %v253 = vadd.s32 %v188, %v202
  %v254 = vadd.s32 %v189, %v202
  %v255 = vadd.s32 %v190, %v202
  %v256 = vadd.s32 %v191, %v202
  %v257 = vadd.s32 %v192, %v202
  %v258 = vadd.s32 %v193, %v202
  %v259 = vadd.s32 %v194, %v202
  %v260 = vadd.s32 %v195, %v202
  %v261 = vadd.s32 %v196, %v202
  %v262 = vadd.s32 %v197, %v202
  %v263 = vadd.s32 %v198, %v202
  %v264 = vadd.s32 %v199, %v202
  %v265 = vadd.s32 %v200, %v202
  %v266 = vadd.s32 %v201, %v202
  %v267 = vlaneseq
  %v268 = vand.u32 %v267, 127
  %v269 = vmul.u32 %v268, 256
  %vm270 = vcmp.ge.s32.totalorder %v203, %v269
  %vm271 = vcmp.ge.s32.totalorder %v204, %v269
  %vm272 = vcmp.ge.s32.totalorder %v205, %v269
  %vm273 = vcmp.ge.s32.totalorder %v206, %v269
  %vm274 = vcmp.ge.s32.totalorder %v207, %v269
  %vm275 = vcmp.ge.s32.totalorder %v208, %v269
  %vm276 = vcmp.ge.s32.totalorder %v209, %v269
  %vm277 = vcmp.ge.s32.totalorder %v210, %v269
  %vm278 = vcmp.ge.s32.totalorder %v211, %v269
  %vm279 = vcmp.ge.s32.totalorder %v212, %v269
  %vm280 = vcmp.ge.s32.totalorder %v213, %v269
  %vm281 = vcmp.ge.s32.totalorder %v214, %v269
  %vm282 = vcmp.ge.s32.totalorder %v215, %v269
  %vm283 = vcmp.ge.s32.totalorder %v216, %v269
  %vm284 = vcmp.ge.s32.totalorder %v217, %v269
  %vm285 = vcmp.ge.s32.totalorder %v218, %v269
  %vm286 = vcmp.ge.s32.totalorder %v219, %v269
  %vm287 = vcmp.ge.s32.totalorder %v220, %v269
  %vm288 = vcmp.ge.s32.totalorder %v221, %v269
  %vm289 = vcmp.ge.s32.totalorder %v222, %v269
  %vm290 = vcmp.ge.s32.totalorder %v223, %v269
  %vm291 = vcmp.ge.s32.totalorder %v224, %v269
  %vm292 = vcmp.ge.s32.totalorder %v225, %v269
  %vm293 = vcmp.ge.s32.totalorder %v226, %v269
  %vm294 = vcmp.ge.s32.totalorder %v227, %v269
  %vm295 = vcmp.ge.s32.totalorder %v228, %v269
  %vm296 = vcmp.ge.s32.totalorder %v229, %v269
  %vm297 = vcmp.ge.s32.totalorder %v230, %v269
  %vm298 = vcmp.ge.s32.totalorder %v231, %v269
  %vm299 = vcmp.ge.s32.totalorder %v232, %v269
  %vm300 = vcmp.ge.s32.totalorder %v233, %v269
  %vm301 = vcmp.ge.s32.totalorder %v234, %v269
  %vm302 = vcmp.ge.s32.totalorder %v235, %v269
  %vm303 = vcmp.ge.s32.totalorder %v236, %v269
  %vm304 = vcmp.ge.s32.totalorder %v237, %v269
  %vm305 = vcmp.ge.s32.totalorder %v238, %v269
  %vm306 = vcmp.ge.s32.totalorder %v239, %v269
  %vm307 = vcmp.ge.s32.totalorder %v240, %v269
  %vm308 = vcmp.ge.s32.totalorder %v241, %v269
  %vm309 = vcmp.ge.s32.totalorder %v242, %v269
  %vm310 = vcmp.ge.s32.totalorder %v243, %v269
  %vm311 = vcmp.ge.s32.totalorder %v244, %v269
  %vm312 = vcmp.ge.s32.totalorder %v245, %v269
  %vm313 = vcmp.ge.s32.totalorder %v246, %v269
  %vm314 = vcmp.ge.s32.totalorder %v247, %v269
  %vm315 = vcmp.ge.s32.totalorder %v248, %v269
  %vm316 = vcmp.ge.s32.totalorder %v249, %v269
  %vm317 = vcmp.ge.s32.totalorder %v250, %v269
  %vm318 = vcmp.ge.s32.totalorder %v251, %v269
  %vm319 = vcmp.ge.s32.totalorder %v252, %v269
  %vm320 = vcmp.ge.s32.totalorder %v253, %v269
  %vm321 = vcmp.ge.s32.totalorder %v254, %v269
  %vm322 = vcmp.ge.s32.totalorder %v255, %v269
  %vm323 = vcmp.ge.s32.totalorder %v256, %v269
  %vm324 = vcmp.ge.s32.totalorder %v257, %v269
  %vm325 = vcmp.ge.s32.totalorder %v258, %v269
  %vm326 = vcmp.ge.s32.totalorder %v259, %v269
  %vm327 = vcmp.ge.s32.totalorder %v260, %v269
  %vm328 = vcmp.ge.s32.totalorder %v261, %v269
  %vm329 = vcmp.ge.s32.totalorder %v262, %v269
  %vm330 = vcmp.ge.s32.totalorder %v263, %v269
  %vm331 = vcmp.ge.s32.totalorder %v264, %v269
  %vm332 = vcmp.ge.s32.totalorder %v265, %v269
  %vm333 = vcmp.ge.s32.totalorder %v266, %v269
  %v334 = vadd.s32 %v269, 256
  %vm335 = vcmp.lt.s32.totalorder %v203, %v334
  %vm336 = vcmp.lt.s32.totalorder %v204, %v334
  %vm337 = vcmp.lt.s32.totalorder %v205, %v334
  %vm338 = vcmp.lt.s32.totalorder %v206, %v334
  %vm339 = vcmp.lt.s32.totalorder %v207, %v334
  %vm340 = vcmp.lt.s32.totalorder %v208, %v334
  %vm341 = vcmp.lt.s32.totalorder %v209, %v334
  %vm342 = vcmp.lt.s32.totalorder %v210, %v334
  %vm343 = vcmp.lt.s32.totalorder %v211, %v334
  %vm344 = vcmp.lt.s32.totalorder %v212, %v334
  %vm345 = vcmp.lt.s32.totalorder %v213, %v334
  %vm346 = vcmp.lt.s32.totalorder %v214, %v334
  %vm347 = vcmp.lt.s32.totalorder %v215, %v334
  %vm348 = vcmp.lt.s32.totalorder %v216, %v334
  %vm349 = vcmp.lt.s32.totalorder %v217, %v334
  %vm350 = vcmp.lt.s32.totalorder %v218, %v334
  %vm351 = vcmp.lt.s32.totalorder %v219, %v334
  %vm352 = vcmp.lt.s32.totalorder %v220, %v334
  %vm353 = vcmp.lt.s32.totalorder %v221, %v334
  %vm354 = vcmp.lt.s32.totalorder %v222, %v334
  %vm355 = vcmp.lt.s32.totalorder %v223, %v334
  %vm356 = vcmp.lt.s32.totalorder %v224, %v334
  %vm357 = vcmp.lt.s32.totalorder %v225, %v334
  %vm358 = vcmp.lt.s32.totalorder %v226, %v334
  %vm359 = vcmp.lt.s32.totalorder %v227, %v334
  %vm360 = vcmp.lt.s32.totalorder %v228, %v334
  %vm361 = vcmp.lt.s32.totalorder %v229, %v334
  %vm362 = vcmp.lt.s32.totalorder %v230, %v334
  %vm363 = vcmp.lt.s32.totalorder %v231, %v334
  %vm364 = vcmp.lt.s32.totalorder %v232, %v334
  %vm365 = vcmp.lt.s32.totalorder %v233, %v334
  %vm366 = vcmp.lt.s32.totalorder %v234, %v334
  %vm367 = vcmp.lt.s32.totalorder %v235, %v334
  %vm368 = vcmp.lt.s32.totalorder %v236, %v334
  %vm369 = vcmp.lt.s32.totalorder %v237, %v334
  %vm370 = vcmp.lt.s32.totalorder %v238, %v334
  %vm371 = vcmp.lt.s32.totalorder %v239, %v334
  %vm372 = vcmp.lt.s32.totalorder %v240, %v334
  %vm373 = vcmp.lt.s32.totalorder %v241, %v334
  %vm374 = vcmp.lt.s32.totalorder %v242, %v334
  %vm375 = vcmp.lt.s32.totalorder %v243, %v334
  %vm376 = vcmp.lt.s32.totalorder %v244, %v334
  %vm377 = vcmp.lt.s32.totalorder %v245, %v334
  %vm378 = vcmp.lt.s32.totalorder %v246, %v334
  %vm379 = vcmp.lt.s32.totalorder %v247, %v334
  %vm380 = vcmp.lt.s32.totalorder %v248, %v334
  %vm381 = vcmp.lt.s32.totalorder %v249, %v334
  %vm382 = vcmp.lt.s32.totalorder %v250, %v334
  %vm383 = vcmp.lt.s32.totalorder %v251, %v334
  %vm384 = vcmp.lt.s32.totalorder %v252, %v334
  %vm385 = vcmp.lt.s32.totalorder %v253, %v334
  %vm386 = vcmp.lt.s32.totalorder %v254, %v334
  %vm387 = vcmp.lt.s32.totalorder %v255, %v334
  %vm388 = vcmp.lt.s32.totalorder %v256, %v334
  %vm389 = vcmp.lt.s32.totalorder %v257, %v334
  %vm390 = vcmp.lt.s32.totalorder %v258, %v334
  %vm391 = vcmp.lt.s32.totalorder %v259, %v334
  %vm392 = vcmp.lt.s32.totalorder %v260, %v334
  %vm393 = vcmp.lt.s32.totalorder %v261, %v334
  %vm394 = vcmp.lt.s32.totalorder %v262, %v334
  %vm395 = vcmp.lt.s32.totalorder %v263, %v334
  %vm396 = vcmp.lt.s32.totalorder %v264, %v334
  %vm397 = vcmp.lt.s32.totalorder %v265, %v334
  %vm398 = vcmp.lt.s32.totalorder %v266, %v334
  %vm399 = vmand %vm270, %vm335
  %vm400 = vmand %vm271, %vm336
  %vm401 = vmand %vm272, %vm337
  %vm402 = vmand %vm273, %vm338
  %vm403 = vmand %vm274, %vm339
  %vm404 = vmand %vm275, %vm340
  %vm405 = vmand %vm276, %vm341
  %vm406 = vmand %vm277, %vm342
  %vm407 = vmand %vm278, %vm343
  %vm408 = vmand %vm279, %vm344
  %vm409 = vmand %vm280, %vm345
  %vm410 = vmand %vm281, %vm346
  %vm411 = vmand %vm282, %vm347
  %vm412 = vmand %vm283, %vm348
  %vm413 = vmand %vm284, %vm349
  %vm414 = vmand %vm285, %vm350
  %vm415 = vmand %vm286, %vm351
  %vm416 = vmand %vm287, %vm352
  %vm417 = vmand %vm288, %vm353
  %vm418 = vmand %vm289, %vm354
  %vm419 = vmand %vm290, %vm355
  %vm420 = vmand %vm291, %vm356
  %vm421 = vmand %vm292, %vm357
  %vm422 = vmand %vm293, %vm358
  %vm423 = vmand %vm294, %vm359
  %vm424 = vmand %vm295, %vm360
  %vm425 = vmand %vm296, %vm361
  %vm426 = vmand %vm297, %vm362
  %vm427 = vmand %vm298, %vm363
  %vm428 = vmand %vm299, %vm364
  %vm429 = vmand %vm300, %vm365
  %vm430 = vmand %vm301, %vm366
  %vm431 = vmand %vm302, %vm367
  %vm432 = vmand %vm303, %vm368
  %vm433 = vmand %vm304, %vm369
  %vm434 = vmand %vm305, %vm370
  %vm435 = vmand %vm306, %vm371
  %vm436 = vmand %vm307, %vm372
  %vm437 = vmand %vm308, %vm373
  %vm438 = vmand %vm309, %vm374
  %vm439 = vmand %vm310, %vm375
  %vm440 = vmand %vm311, %vm376
  %vm441 = vmand %vm312, %vm377
  %vm442 = vmand %vm313, %vm378
  %vm443 = vmand %vm314, %vm379
  %vm444 = vmand %vm315, %vm380
  %vm445 = vmand %vm316, %vm381
  %vm446 = vmand %vm317, %vm382
  %vm447 = vmand %vm318, %vm383
  %vm448 = vmand %vm319, %vm384
  %vm449 = vmand %vm320, %vm385
  %vm450 = vmand %vm321, %vm386
  %vm451 = vmand %vm322, %vm387
  %vm452 = vmand %vm323, %vm388
  %vm453 = vmand %vm324, %vm389
  %vm454 = vmand %vm325, %vm390
  %vm455 = vmand %vm326, %vm391
  %vm456 = vmand %vm327, %vm392
  %vm457 = vmand %vm328, %vm393
  %vm458 = vmand %vm329, %vm394
  %vm459 = vmand %vm330, %vm395
  %vm460 = vmand %vm331, %vm396
  %vm461 = vmand %vm332, %vm397
  %vm462 = vmand %vm333, %vm398
  %v463 = vsel %vm399, 1.0, 0.0
  %v464 = vsel %vm400, 1.0, 0.0
  %v465 = vsel %vm401, 1.0, 0.0
  %v466 = vsel %vm402, 1.0, 0.0
  %v467 = vsel %vm403, 1.0, 0.0
  %v468 = vsel %vm404, 1.0, 0.0
  %v469 = vsel %vm405, 1.0, 0.0
  %v470 = vsel %vm406, 1.0, 0.0
  %v471 = vsel %vm407, 1.0, 0.0
  %v472 = vsel %vm408, 1.0, 0.0
  %v473 = vsel %vm409, 1.0, 0.0
  %v474 = vsel %vm410, 1.0, 0.0
  %v475 = vsel %vm411, 1.0, 0.0
  %v476 = vsel %vm412, 1.0, 0.0
  %v477 = vsel %vm413, 1.0, 0.0
  %v478 = vsel %vm414, 1.0, 0.0
  %v479 = vsel %vm415, 1.0, 0.0
  %v480 = vsel %vm416, 1.0, 0.0
  %v481 = vsel %vm417, 1.0, 0.0
  %v482 = vsel %vm418, 1.0, 0.0
  %v483 = vsel %vm419, 1.0, 0.0
  %v484 = vsel %vm420, 1.0, 0.0
  %v485 = vsel %vm421, 1.0, 0.0
  %v486 = vsel %vm422, 1.0, 0.0
  %v487 = vsel %vm423, 1.0, 0.0
  %v488 = vsel %vm424, 1.0, 0.0
  %v489 = vsel %vm425, 1.0, 0.0
  %v490 = vsel %vm426, 1.0, 0.0
  %v491 = vsel %vm427, 1.0, 0.0
  %v492 = vsel %vm428, 1.0, 0.0
  %v493 = vsel %vm429, 1.0, 0.0
  %v494 = vsel %vm430, 1.0, 0.0
  %v495 = vsel %vm431, 1.0, 0.0
  %v496 = vsel %vm432, 1.0, 0.0
  %v497 = vsel %vm433, 1.0, 0.0
  %v498 = vsel %vm434, 1.0, 0.0
  %v499 = vsel %vm435, 1.0, 0.0
  %v500 = vsel %vm436, 1.0, 0.0
  %v501 = vsel %vm437, 1.0, 0.0
  %v502 = vsel %vm438, 1.0, 0.0
  %v503 = vsel %vm439, 1.0, 0.0
  %v504 = vsel %vm440, 1.0, 0.0
  %v505 = vsel %vm441, 1.0, 0.0
  %v506 = vsel %vm442, 1.0, 0.0
  %v507 = vsel %vm443, 1.0, 0.0
  %v508 = vsel %vm444, 1.0, 0.0
  %v509 = vsel %vm445, 1.0, 0.0
  %v510 = vsel %vm446, 1.0, 0.0
  %v511 = vsel %vm447, 1.0, 0.0
  %v512 = vsel %vm448, 1.0, 0.0
  %v513 = vsel %vm449, 1.0, 0.0
  %v514 = vsel %vm450, 1.0, 0.0
  %v515 = vsel %vm451, 1.0, 0.0
  %v516 = vsel %vm452, 1.0, 0.0
  %v517 = vsel %vm453, 1.0, 0.0
  %v518 = vsel %vm454, 1.0, 0.0
  %v519 = vsel %vm455, 1.0, 0.0
  %v520 = vsel %vm456, 1.0, 0.0
  %v521 = vsel %vm457, 1.0, 0.0
  %v522 = vsel %vm458, 1.0, 0.0
  %v523 = vsel %vm459, 1.0, 0.0
  %v524 = vsel %vm460, 1.0, 0.0
  %v525 = vsel %vm461, 1.0, 0.0
  %v526 = vsel %vm462, 1.0, 0.0
  %v527 = vld [vmem:[#allocation2] sm:$0xff]
  %528 = vmatpush.msra.mxu0 %v478
  %529 = vmatpush.msra.mxu0 %v477
  %530 = vmatpush.msra.mxu0 %v476
  %531 = vmatpush.msra.mxu0 %v475
  %532 = vmatpush.msra.mxu0 %v474
  %533 = vmatpush.msra.mxu0 %v473
  %534 = vmatpush.msra.mxu0 %v472
  %535 = vmatpush.msra.mxu0 %v471
  %536 = vmatpush.msra.mxu0 %v470
  %537 = vmatpush.msra.mxu0 %v469
  %538 = vmatpush.msra.mxu0 %v468
  %539 = vmatpush.msra.mxu0 %v467
  %540 = vmatpush.msra.mxu0 %v466
  %541 = vmatpush.msra.mxu0 %v465
  %542 = vmatpush.msra.mxu0 %v464
  %543 = vmatpush.msra.mxu0 %v463
  %544 = vmatmul.f32.gmra.mxu0 %v74
  %v545 = vpop.f32.mrf.mxu0
  %v546 = vadd.f32 0.0, %v545
  %547 = vdwg.mxu0
  %548 = vmatpush.msra.mxu0 %v494
  %549 = vmatpush.msra.mxu0 %v493
  %550 = vmatpush.msra.mxu0 %v492
  %551 = vmatpush.msra.mxu0 %v491
  %552 = vmatpush.msra.mxu0 %v490
  %553 = vmatpush.msra.mxu0 %v489
  %554 = vmatpush.msra.mxu0 %v488
  %555 = vmatpush.msra.mxu0 %v487
  %556 = vmatpush.msra.mxu0 %v486
  %557 = vmatpush.msra.mxu0 %v485
  %558 = vmatpush.msra.mxu0 %v484
  %559 = vmatpush.msra.mxu0 %v483
  %560 = vmatpush.msra.mxu0 %v482
  %561 = vmatpush.msra.mxu0 %v481
  %562 = vmatpush.msra.mxu0 %v480
  %563 = vmatpush.msra.mxu0 %v479
  %564 = vmatmul.f32.gmra.mxu0 %v94
  %v565 = vpop.f32.mrf.mxu0
  %v566 = vadd.f32 %v546, %v565
  %567 = vdwg.mxu0
  %568 = vmatpush.msra.mxu0 %v510
  %569 = vmatpush.msra.mxu0 %v509
  %570 = vmatpush.msra.mxu0 %v508
  %571 = vmatpush.msra.mxu0 %v507
  %572 = vmatpush.msra.mxu0 %v506
  %573 = vmatpush.msra.mxu0 %v505
  %574 = vmatpush.msra.mxu0 %v504
  %575 = vmatpush.msra.mxu0 %v503
  %576 = vmatpush.msra.mxu0 %v502
  %577 = vmatpush.msra.mxu0 %v501
  %578 = vmatpush.msra.mxu0 %v500
  %579 = vmatpush.msra.mxu0 %v499
  %580 = vmatpush.msra.mxu0 %v498
  %581 = vmatpush.msra.mxu0 %v497
  %582 = vmatpush.msra.mxu0 %v496
  %583 = vmatpush.msra.mxu0 %v495
  %584 = vmatmul.f32.gmra.mxu0 %v114
  %v585 = vpop.f32.mrf.mxu0
  %v586 = vadd.f32 %v566, %v585
  %587 = vdwg.mxu0
  %588 = vmatpush.msra.mxu0 %v526
  %589 = vmatpush.msra.mxu0 %v525
  %590 = vmatpush.msra.mxu0 %v524
  %591 = vmatpush.msra.mxu0 %v523
  %592 = vmatpush.msra.mxu0 %v522
  %593 = vmatpush.msra.mxu0 %v521
  %594 = vmatpush.msra.mxu0 %v520
  %595 = vmatpush.msra.mxu0 %v519
  %596 = vmatpush.msra.mxu0 %v518
  %597 = vmatpush.msra.mxu0 %v517
  %598 = vmatpush.msra.mxu0 %v516
  %599 = vmatpush.msra.mxu0 %v515
  %600 = vmatpush.msra.mxu0 %v514
  %601 = vmatpush.msra.mxu0 %v513
  %602 = vmatpush.msra.mxu0 %v512
  %603 = vmatpush.msra.mxu0 %v511
  %604 = vmatmul.f32.gmra.mxu0 %v134
  %v605 = vpop.f32.mrf.mxu0
  %v606 = vadd.f32 %v586, %v605
  %607 = vdwg.mxu0
  %v608 = vadd.f32 %v527, %v606
  %vm609 = vcmask 64512
  %610 = vst.msk [vmem:[#allocation2] sm:$0xff] %vm609, %v608
  %v611 = vld [vmem:[#allocation3] sm:$0xff]
  %v612 = vmul.f32 %v74, %v74
  %v613 = vmul.f32 %v94, %v94
  %v614 = vmul.f32 %v114, %v114
  %v615 = vmul.f32 %v134, %v134
  %616 = vmatpush.msra.mxu0 %v478
  %617 = vmatpush.msra.mxu0 %v477
  %618 = vmatpush.msra.mxu0 %v476
  %619 = vmatpush.msra.mxu0 %v475
  %620 = vmatpush.msra.mxu0 %v474
  %621 = vmatpush.msra.mxu0 %v473
  %622 = vmatpush.msra.mxu0 %v472
  %623 = vmatpush.msra.mxu0 %v471
  %624 = vmatpush.msra.mxu0 %v470
  %625 = vmatpush.msra.mxu0 %v469
  %626 = vmatpush.msra.mxu0 %v468
  %627 = vmatpush.msra.mxu0 %v467
  %628 = vmatpush.msra.mxu0 %v466
  %629 = vmatpush.msra.mxu0 %v465
  %630 = vmatpush.msra.mxu0 %v464
  %631 = vmatpush.msra.mxu0 %v463
  %632 = vmatmul.f32.gmra.mxu0 %v612
  %v633 = vpop.f32.mrf.mxu0
  %v634 = vadd.f32 0.0, %v633
  %635 = vdwg.mxu0
  %636 = vmatpush.msra.mxu0 %v494
  %637 = vmatpush.msra.mxu0 %v493
  %638 = vmatpush.msra.mxu0 %v492
  %639 = vmatpush.msra.mxu0 %v491
  %640 = vmatpush.msra.mxu0 %v490
  %641 = vmatpush.msra.mxu0 %v489
  %642 = vmatpush.msra.mxu0 %v488
  %643 = vmatpush.msra.mxu0 %v487
  %644 = vmatpush.msra.mxu0 %v486
  %645 = vmatpush.msra.mxu0 %v485
  %646 = vmatpush.msra.mxu0 %v484
  %647 = vmatpush.msra.mxu0 %v483
  %648 = vmatpush.msra.mxu0 %v482
  %649 = vmatpush.msra.mxu0 %v481
  %650 = vmatpush.msra.mxu0 %v480
  %651 = vmatpush.msra.mxu0 %v479
  %652 = vmatmul.f32.gmra.mxu0 %v613
  %v653 = vpop.f32.mrf.mxu0
  %v654 = vadd.f32 %v634, %v653
  %655 = vdwg.mxu0
  %656 = vmatpush.msra.mxu0 %v510
  %657 = vmatpush.msra.mxu0 %v509
  %658 = vmatpush.msra.mxu0 %v508
  %659 = vmatpush.msra.mxu0 %v507
  %660 = vmatpush.msra.mxu0 %v506
  %661 = vmatpush.msra.mxu0 %v505
  %662 = vmatpush.msra.mxu0 %v504
  %663 = vmatpush.msra.mxu0 %v503
  %664 = vmatpush.msra.mxu0 %v502
  %665 = vmatpush.msra.mxu0 %v501
  %666 = vmatpush.msra.mxu0 %v500
  %667 = vmatpush.msra.mxu0 %v499
  %668 = vmatpush.msra.mxu0 %v498
  %669 = vmatpush.msra.mxu0 %v497
  %670 = vmatpush.msra.mxu0 %v496
  %671 = vmatpush.msra.mxu0 %v495
  %672 = vmatmul.f32.gmra.mxu0 %v614
  %v673 = vpop.f32.mrf.mxu0
  %v674 = vadd.f32 %v654, %v673
  %675 = vdwg.mxu0
  %676 = vmatpush.msra.mxu0 %v526
  %677 = vmatpush.msra.mxu0 %v525
  %678 = vmatpush.msra.mxu0 %v524
  %679 = vmatpush.msra.mxu0 %v523
  %680 = vmatpush.msra.mxu0 %v522
  %681 = vmatpush.msra.mxu0 %v521
  %682 = vmatpush.msra.mxu0 %v520
  %683 = vmatpush.msra.mxu0 %v519
  %684 = vmatpush.msra.mxu0 %v518
  %685 = vmatpush.msra.mxu0 %v517
  %686 = vmatpush.msra.mxu0 %v516
  %687 = vmatpush.msra.mxu0 %v515
  %688 = vmatpush.msra.mxu0 %v514
  %689 = vmatpush.msra.mxu0 %v513
  %690 = vmatpush.msra.mxu0 %v512
  %691 = vmatpush.msra.mxu0 %v511
  %692 = vmatmul.f32.gmra.mxu0 %v615
  %v693 = vpop.f32.mrf.mxu0
  %v694 = vadd.f32 %v674, %v693
  %695 = vdwg.mxu0
  %v696 = vadd.f32 %v611, %v694
  %697 = vst.msk [vmem:[#allocation3] sm:$0xff] %vm609, %v696
  // Predicated region
  $region30: #{model_forward.1} parent=0 // pred_check
    %p698 = pneg %p23
  $region31: #{model_forward.1} parent=0 // pred_check_branch
    %700 = sbr.rel (%p698) target = $region33
  $region32: #{model_forward.1} parent=0 // pred_region
    %v701 = vld [vmem:[#allocation2] sm:$0xff]
    %v702 = vsel %vm609, %v701, 0.0
    %703 = vadd.xlane.f32.xlu0 %v702
    %v704 = vpop.xlane.xlu0 %703
    %v705 = vld [vmem:[#allocation3] sm:$0xff]
    %v706 = vsel %vm609, %v705, 0.0
    %707 = vadd.xlane.f32.xlu0 %v706
    %v708 = vpop.xlane.xlu0 %707
    %v709 = vmul.f32 %v704, 0.001953125
    %v710 = vmul.f32 %v708, 0.001953125
    %v711 = vmul.f32 %v709, %v709
    %v712 = vsub.f32 %v710, %v711
    %v713 = vadd.f32 %v712, 1e-05
    %v714 = vrsqrt.pop %v713
    %v715 = vmul.f32 %v714, %v713
    %v716 = vmul.f32 %v715, %v714
    %v717 = vmul.f32 0.5, %v716
    %v718 = vsub.f32 1.5, %v717
    %v719 = vmul.f32 %v714, %v718
    %vm720 = vweird.f32 %v713
    %vm721 = vweird.f32 %v714
    %vm722 = vmor %vm720, %vm721
    %v723 = vsel %vm722, %v714, %v719
    %v724 = vld [vmem:[%s2] sm:$0xff]
    %v725 = vmul.f32 %v723, %v724
    %v726 = vmul.f32 %v701, 0.00390625
    %v727 = vsub.f32 %v726, %v709
    %729 = vset.pattern.permute.xlu0 0
    %730 = vperm.xlu0 %729, %v725
    %v731 = vpop.permute.xlu0 %730
    %v733 = vmul.f32 %v727, %v731
    %v734 = vld [vmem:[%s3] sm:$0xff]
    %736 = vset.pattern.permute.xlu0 0
    %737 = vperm.xlu0 %736, %v734
    %v738 = vpop.permute.xlu0 %737
    %v740 = vadd.f32 %v733, %v738
    %v741 = vld [vmem:[%s4] sm:$0xff]
    %v742 = vld [vmem:[%s5] sm:$0xff]
    %744 = vset.pattern.permute.xlu0 0
    %745 = vperm.xlu0 %744, %v742
    %v746 = vpop.permute.xlu0 %745
    %v749 = vsel %vm609, %v741, 0
    %751 = vmatpush.msra.mxu0 0.0
    %752 = vmatpush.msra.mxu0 0.0
    %753 = vmatpush.msra.mxu0 0.0
    %754 = vmatpush.msra.mxu0 0.0
    %755 = vmatpush.msra.mxu0 0.0
    %756 = vmatpush.msra.mxu0 0.0
    %757 = vmatpush.msra.mxu0 0.0
    %758 = vmatpush.msra.mxu0 0.0
    %759 = vmatpush.msra.mxu0 0.0
    %760 = vmatpush.msra.mxu0 0.0
    %761 = vmatpush.msra.mxu0 0.0
    %762 = vmatpush.msra.mxu0 0.0
    %763 = vmatpush.msra.mxu0 0.0
    %764 = vmatpush.msra.mxu0 0.0
    %765 = vmatpush.msra.mxu0 0.0
    %766 = vmatpush.msra.mxu0 %v740
    %767 = vmatmul.f32.gmra.mxu0 %v749
    %v768 = vpop.f32.mrf.mxu0
    %v769 = vadd.f32 %v746, %v768
    %770 = vdwg.mxu0
    %771 = vst.msk [vmem:[%s6] sm:$0xff] %vm609, %v769
  $region33: #{model_forward.1} parent=0 // pred_fallthru
    _
  // Predicated region
  $region34: #{model_forward.1} parent=0 // pred_check
    _
  $region35: #{model_forward.1} parent=0 // pred_check_branch
    %773 = sbr.rel (0) target = $region37
  $region36: #{model_forward.1} parent=0 // pred_region
    _
  $region37: #{model_forward.1} parent=0 // pred_fallthru
    _
  // Predicated region
  $region38: #{model_forward.1} parent=0 // pred_check
    _
  $region39: #{model_forward.1} parent=0 // pred_check_branch
    %775 = sbr.rel (0) target = $region41
  $region40: #{model_forward.1} parent=0 // pred_region
    _
  $region41: #{model_forward.1} parent=0 // pred_fallthru
    _

</llo_original>
